<compile_context>
chip_gen: v5e
topology: v5e:2x2
jax: 0.10.0
libtpu: 0.0.40
codegen_flags: <defaults>
</compile_context>

<pallas_src>
import numpy as np
import jax
import jax.numpy as jnp
from jax.experimental import pallas as pl
from jax.experimental.pallas import tpu as pltpu


def _kl_zero_kernel(kl_ref):
    # No submodule exposes kl_loss(), so the accumulated KL term is 0.0.
    kl_ref[0, 0] = jnp.float32(0.0)


# Grid-less, zero-input kernel: single invocation, writes one scalar to SMEM.
_kl_zero = pl.pallas_call(
    _kl_zero_kernel,
    out_shape=jax.ShapeDtypeStruct((1, 1), jnp.float32),
    out_specs=pl.BlockSpec(memory_space=pltpu.SMEM),
)


@jax.jit
def module_wrapper_forward(x):
    """Pallas-backed ModuleWrapper.forward: returns (x, kl)."""
    # Identity pass-through: x never touches the kernel, so there is no DMA,
    # no aliasing/donation requirement, and no possible hidden HBM copy.
    kl = _kl_zero().reshape(())  # scalar reshape folded into the same jit
    return x, kl


if __name__ == "__main__":
    key = jax.random.PRNGKey(0)
    # Small NCHW input: batch=2, channels=4, spatial=16x16.
    x = jax.random.normal(key, (2, 4, 16, 16), dtype=jnp.float32)

    y, kl = module_wrapper_forward(x)
    jax.block_until_ready((y, kl))

    # Reference semantics: identity output, kl == 0.0
    assert y.shape == x.shape and y.dtype == x.dtype
    assert np.allclose(np.asarray(y), np.asarray(x)), "pass-through mismatch"
    assert float(kl) == 0.0, "kl must be 0.0 for ModuleWrapper with no children"

    print("KERNEL_OK")
</pallas_src>

<mosaic_0001>
module attributes {stable_mosaic.version = 11 : i64} {
  func.func @_kl_zero_kernel(%arg0: memref<1x1xf32, #tpu.memory_space<smem>>) attributes {dimension_semantics = [], scalar_prefetch = 0 : i64, scratch_operands = 0 : i64, tpu.core_type = #tpu.core_type<tc>} {
    %cst = arith.constant 0.000000e+00 : f32
    %c0 = arith.constant 0 : index
    %c0_0 = arith.constant 0 : index
    %0 = memref.load %arg0[%c0, %c0_0] : memref<1x1xf32, #tpu.memory_space<smem>>
    memref.store %cst, %arg0[%c0, %c0_0] : memref<1x1xf32, #tpu.memory_space<smem>>
    return
  }
}

</mosaic_0001>

<llo_original>
// kernel: module_wrapper_forward.1
$region0: #{module_wrapper_forward.1}
  #allocation0 [shape = 'u32[]', space=smem, size = 0x4, offset = 0x4, fixed_abs, tag = 'smem constant byte address 0x4 - core index']
  #allocation1 [shape = 'u32[72,128]{1,0:T(1,128)}', space=vmem, size = 0x9000, scoped, tag = 'internal scratch']
  %s0 = inlined_call_operand.hbm [shape: f32[1,1], index: 0, kind: output, shape index: {}]
  %s1 = sld [smem:[#allocation0]]
  $region10: #{module_wrapper_forward.1} parent=0
    _
  %s3 = ssub.s32 1, %s1
  %s4 = scalar_select 0, %s3, %s1
  $region1: #{module_wrapper_forward.1} parent=0
    #allocation2 [shape = 'u8[512]{0}', space=smem, size = 0x200, scoped, tag = 'output window, operand 0, single buffered']
    #allocation3 [shape = 's32[1]{0}', space=sflag, size = 0x4, scoped, tag = 'scoped memory for module_wrapper_forward.1']
    %5 = vsyncpa [#allocation3], 0
    %s6 = scalar_lea.smem [#allocation2], 0
    %7 = sst [smem:[%s6]] 0.0
    // Predicated region
    $region2: #{module_wrapper_forward.1} parent=1 // pred_check
      _
    $region3: #{module_wrapper_forward.1} parent=1 // pred_check_branch
      %9 = sbr.rel (0) target = $region5
    $region4: #{module_wrapper_forward.1} parent=1 // pred_region
      %11 = vsyncadd [#allocation3], 0
      %s13 = sshll.u32 %s0, 4
      %s14 = int_to_ptr.hbm [resolvable:$true] %s13
      %16 = dma.smem_to_hbm [#allocation2], 16, %s14, [#allocation3]
    $region5: #{module_wrapper_forward.1} parent=1 // pred_fallthru
      _
    // Predicated region
    $region6: #{module_wrapper_forward.1} parent=1 // pred_check
      _
    $region7: #{module_wrapper_forward.1} parent=1 // pred_check_branch
      %18 = sbr.rel (0) target = $region9
    $region8: #{module_wrapper_forward.1} parent=1 // pred_region
      %20 = dma.done [#allocation3], 16
    $region9: #{module_wrapper_forward.1} parent=1 // pred_fallthru
      _
    %21 = sfence
    %22 = vsyncpa [#allocation3], 1

</llo_original>
